<compile_context>
chip_gen: v7x
topology: tpu7x:2x2x1
jax: 0.10.0
libtpu: 0.0.40
codegen_flags: <defaults>
</compile_context>

<pallas_src>
import math

import jax
import jax.numpy as jnp
from jax.experimental import pallas as pl
from jax.experimental.pallas import tpu as pltpu

_EPS = 1e-8       # torch.cosine_similarity default eps
_LANE = 128       # TPU lane width
_SUBLANE = 8      # f32 sublane packing
_NUM_SPLITS = 2   # leading "parallel" axis: feeds both TensorCores on v7x


def _sgcs_partial_kernel(x_ref, y_ref, o_ref):
    """Accumulate lane-wise partial sums of x*y, x*x, y*y per sample.

    x_ref, y_ref : (B, TR, 128) input tiles streamed over grid axis 1.
    o_ref        : (1, 3, B, 128) f32 partial block, resident across the
                   reduction axis (its block index depends only on the
                   parallel axis).  Slot 0 = dot, 1 = ||x||^2, 2 = ||y||^2.
    """
    k = pl.program_id(1)

    @pl.when(k == 0)
    def _init():
        o_ref[...] = jnp.zeros_like(o_ref)

    x = x_ref[...].astype(jnp.float32)   # (B, TR, 128), accumulate in f32
    y = y_ref[...].astype(jnp.float32)

    # Reduce only over the sublane (TR) axis; keep lanes for the epilogue.
    o_ref[0, 0] += jnp.sum(x * y, axis=1)   # (B, 128)
    o_ref[0, 1] += jnp.sum(x * x, axis=1)
    o_ref[0, 2] += jnp.sum(y * y, axis=1)


def cal_sgcs(inp, tgt, *, tile_rows=None):
    """inp, tgt: (B, C, H, W) arrays (f32 or bf16). Returns 0-d f32 scalar."""
    assert inp.shape == tgt.shape
    b = inp.shape[0]
    n = math.prod(inp.shape[1:])

    x = inp.reshape(b, n)
    y = tgt.reshape(b, n)

    itemsize = jnp.dtype(inp.dtype).itemsize
    r = pl.cdiv(n, _LANE)                       # 128-lane rows per sample

    if tile_rows is None:
        # ~2 MiB per input tile (streaming sweet spot); BlockSpec double-
        # buffers, so budget = 2 inputs x 2 buffers x tile << scoped VMEM.
        target_tile_bytes = 2 * 1024 * 1024
        tile_rows = target_tile_bytes // (b * _LANE * itemsize)
    tr = max(_SUBLANE, (int(tile_rows) // _SUBLANE) * _SUBLANE)
    tr = min(tr, pl.cdiv(r, _SUBLANE) * _SUBLANE)   # don't exceed (padded) data

    rows_super = tr * _NUM_SPLITS
    r_pad = pl.cdiv(r, rows_super) * rows_super
    n_pad = r_pad * _LANE
    if n_pad != n:
        # zero padding contributes 0 to dot / ||.||^2 -> exact
        x = jnp.pad(x, ((0, 0), (0, n_pad - n)))
        y = jnp.pad(y, ((0, 0), (0, n_pad - n)))

    x = x.reshape(b, r_pad, _LANE)
    y = y.reshape(b, r_pad, _LANE)

    kc_per_split = r_pad // rows_super
    grid = (_NUM_SPLITS, kc_per_split)

    in_spec = pl.BlockSpec(
        (b, tr, _LANE), lambda p, k: (0, p * kc_per_split + k, 0)
    )
    out_spec = pl.BlockSpec((1, 3, b, _LANE), lambda p, k: (p, 0, 0, 0))

    partials = pl.pallas_call(
        _sgcs_partial_kernel,
        out_shape=jax.ShapeDtypeStruct((_NUM_SPLITS, 3, b, _LANE), jnp.float32),
        grid_spec=pltpu.PrefetchScalarGridSpec(
            num_scalar_prefetch=0,
            grid=grid,
            in_specs=[in_spec, in_spec],
            out_specs=out_spec,
        ),
        compiler_params=pltpu.CompilerParams(
            dimension_semantics=("parallel", "arbitrary"),
            vmem_limit_bytes=32 * 1024 * 1024,
        ),
    )(x, y)

    # Tiny one-time epilogue in JAX: combine split/lane partials, finish the
    # cosine (per-norm eps clamp matches torch.cosine_similarity) + batch sum.
    totals = jnp.sum(partials, axis=(0, 3))          # (3, B)
    dot, xx, yy = totals[0], totals[1], totals[2]
    cos = dot / (jnp.maximum(jnp.sqrt(xx), _EPS) * jnp.maximum(jnp.sqrt(yy), _EPS))
    return jnp.sum(cos)


if __name__ == "__main__":
    key = jax.random.PRNGKey(0)
    k1, k2, k3, k4 = jax.random.split(key, 4)

    def ref_sgcs(a, t):
        bb = a.shape[0]
        xf = a.reshape(bb, -1).astype(jnp.float32)
        yf = t.reshape(bb, -1).astype(jnp.float32)
        dot = jnp.sum(xf * yf, axis=1)
        nx = jnp.maximum(jnp.sqrt(jnp.sum(xf * xf, axis=1)), _EPS)
        ny = jnp.maximum(jnp.sqrt(jnp.sum(yf * yf, axis=1)), _EPS)
        return jnp.sum(dot / (nx * ny))

    # --- test 1: shapes implied by the module, default (auto) tiling -------
    B, C, H, W = 2, 4, 16, 16
    inp = jax.random.normal(k1, (B, C, H, W), dtype=jnp.float32)
    tgt = jax.random.normal(k2, (B, C, H, W), dtype=jnp.float32)
    out = jax.block_until_ready(cal_sgcs(inp, tgt))
    ref = ref_sgcs(inp, tgt)
    assert jnp.allclose(out, ref, atol=1e-5, rtol=1e-5), (out, ref)

    # --- test 2: odd batch, N not a multiple of 128, forced small tile so the
    #             multi-step reduction and both parallel splits are exercised -
    B2, C2, H2, W2 = 3, 4, 30, 30            # N = 3600 -> padded to 4096
    inp2 = jax.random.normal(k3, (B2, C2, H2, W2), dtype=jnp.float32)
    tgt2 = jax.random.normal(k4, (B2, C2, H2, W2), dtype=jnp.float32)
    out2 = jax.block_until_ready(cal_sgcs(inp2, tgt2, tile_rows=8))
    ref2 = ref_sgcs(inp2, tgt2)
    assert jnp.allclose(out2, ref2, atol=1e-5, rtol=1e-5), (out2, ref2)

    # --- test 3: bf16 inputs (half the HBM bytes), f32 accumulation ---------
    out3 = jax.block_until_ready(
        cal_sgcs(inp2.astype(jnp.bfloat16), tgt2.astype(jnp.bfloat16))
    )
    ref3 = ref_sgcs(inp2.astype(jnp.bfloat16), tgt2.astype(jnp.bfloat16))
    assert jnp.allclose(out3, ref3, atol=1e-4, rtol=1e-4), (out3, ref3)

    print("KERNEL_OK")
</pallas_src>

<mosaic_0001>
module attributes {stable_mosaic.version = 11 : i64} {
  func.func @_sgcs_partial_kernel(%arg0: i32, %arg1: i32, %arg2: memref<2x8x128xf32, #tpu.memory_space<vmem>>, %arg3: memref<2x8x128xf32, #tpu.memory_space<vmem>>, %arg4: memref<1x3x2x128xf32, #tpu.memory_space<vmem>>) attributes {dimension_semantics = [#tpu.dimension_semantics<parallel>, #tpu.dimension_semantics<arbitrary>], iteration_bounds = array<i64: 2, 1>, scalar_prefetch = 0 : i64, scratch_operands = 0 : i64, tpu.core_type = #tpu.core_type<tc>, window_params = [{transform_indices = @transform_0, window_bounds = array<i64: 2, 8, 128>}, {transform_indices = @transform_1, window_bounds = array<i64: 2, 8, 128>}, {transform_indices = @transform_2, window_bounds = array<i64: 1, 3, 2, 128>}]} {
    %c0_i32 = arith.constant 0 : i32
    %0 = arith.cmpi eq, %arg1, %c0_i32 : i32
    %1 = arith.extui %0 : i1 to i32
    %c0_i32_0 = arith.constant 0 : i32
    %2 = arith.cmpi ne, %1, %c0_i32_0 : i32
    scf.if %2 {
      %cst_30 = arith.constant 0.000000e+00 : f32
      %29 = vector.broadcast %cst_30 : f32 to vector<1x3x2x128xf32>
      %c0_31 = arith.constant 0 : index
      %c0_32 = arith.constant 0 : index
      %c0_33 = arith.constant 0 : index
      %c0_34 = arith.constant 0 : index
      %30 = vector.load %arg4[%c0_31, %c0_32, %c0_33, %c0_34] : memref<1x3x2x128xf32, #tpu.memory_space<vmem>>, vector<1x3x2x128xf32>
      tpu.vector_store %arg4[%c0_31, %c0_32, %c0_33, %c0_34], %29 {strides = array<i32>} : memref<1x3x2x128xf32, #tpu.memory_space<vmem>>, vector<1x3x2x128xf32>,
    } else {
    }
    %c0 = arith.constant 0 : index
    %c0_1 = arith.constant 0 : index
    %c0_2 = arith.constant 0 : index
    %3 = vector.load %arg2[%c0, %c0_1, %c0_2] : memref<2x8x128xf32, #tpu.memory_space<vmem>>, vector<2x8x128xf32>
    %c0_3 = arith.constant 0 : index
    %c0_4 = arith.constant 0 : index
    %c0_5 = arith.constant 0 : index
    %4 = vector.load %arg3[%c0_3, %c0_4, %c0_5] : memref<2x8x128xf32, #tpu.memory_space<vmem>>, vector<2x8x128xf32>
    %c0_6 = arith.constant 0 : index
    %c0_7 = arith.constant 0 : index
    %c0_8 = arith.constant 0 : index
    %c0_9 = arith.constant 0 : index
    %5 = vector.load %arg4[%c0_6, %c0_7, %c0_8, %c0_9] : memref<1x3x2x128xf32, #tpu.memory_space<vmem>>, vector<1x1x2x128xf32>
    %6 = vector.shape_cast %5 : vector<1x1x2x128xf32> to vector<2x128xf32>
    %7 = arith.mulf %3, %4 : vector<2x8x128xf32>
    %cst = arith.constant dense<0.000000e+00> : vector<2x128xf32>
    %8 = vector.multi_reduction <add>, %7, %cst [1] : vector<2x8x128xf32> to vector<2x128xf32>
    %9 = arith.addf %6, %8 : vector<2x128xf32>
    %c0_10 = arith.constant 0 : index
    %c0_11 = arith.constant 0 : index
    %c0_12 = arith.constant 0 : index
    %c0_13 = arith.constant 0 : index
    %10 = vector.load %arg4[%c0_10, %c0_11, %c0_12, %c0_13] : memref<1x3x2x128xf32, #tpu.memory_space<vmem>>, vector<1x1x2x128xf32>
    %11 = vector.shape_cast %10 : vector<1x1x2x128xf32> to vector<2x128xf32>
    %12 = vector.shape_cast %9 : vector<2x128xf32> to vector<1x1x2x128xf32>
    tpu.vector_store %arg4[%c0_10, %c0_11, %c0_12, %c0_13], %12 {strides = array<i32>} : memref<1x3x2x128xf32, #tpu.memory_space<vmem>>, vector<1x1x2x128xf32>,
    %c0_14 = arith.constant 0 : index
    %c1 = arith.constant 1 : index
    %c0_15 = arith.constant 0 : index
    %c0_16 = arith.constant 0 : index
    %13 = vector.load %arg4[%c0_14, %c1, %c0_15, %c0_16] : memref<1x3x2x128xf32, #tpu.memory_space<vmem>>, vector<1x1x2x128xf32>
    %14 = vector.shape_cast %13 : vector<1x1x2x128xf32> to vector<2x128xf32>
    %15 = arith.mulf %3, %3 : vector<2x8x128xf32>
    %cst_17 = arith.constant dense<0.000000e+00> : vector<2x128xf32>
    %16 = vector.multi_reduction <add>, %15, %cst_17 [1] : vector<2x8x128xf32> to vector<2x128xf32>
    %17 = arith.addf %14, %16 : vector<2x128xf32>
    %c0_18 = arith.constant 0 : index
    %c1_19 = arith.constant 1 : index
    %c0_20 = arith.constant 0 : index
    %c0_21 = arith.constant 0 : index
    %18 = vector.load %arg4[%c0_18, %c1_19, %c0_20, %c0_21] : memref<1x3x2x128xf32, #tpu.memory_space<vmem>>, vector<1x1x2x128xf32>
    %19 = vector.shape_cast %18 : vector<1x1x2x128xf32> to vector<2x128xf32>
    %20 = vector.shape_cast %17 : vector<2x128xf32> to vector<1x1x2x128xf32>
    tpu.vector_store %arg4[%c0_18, %c1_19, %c0_20, %c0_21], %20 {strides = array<i32>} : memref<1x3x2x128xf32, #tpu.memory_space<vmem>>, vector<1x1x2x128xf32>,
    %c0_22 = arith.constant 0 : index
    %c2 = arith.constant 2 : index
    %c0_23 = arith.constant 0 : index
    %c0_24 = arith.constant 0 : index
    %21 = vector.load %arg4[%c0_22, %c2, %c0_23, %c0_24] : memref<1x3x2x128xf32, #tpu.memory_space<vmem>>, vector<1x1x2x128xf32>
    %22 = vector.shape_cast %21 : vector<1x1x2x128xf32> to vector<2x128xf32>
    %23 = arith.mulf %4, %4 : vector<2x8x128xf32>
    %cst_25 = arith.constant dense<0.000000e+00> : vector<2x128xf32>
    %24 = vector.multi_reduction <add>, %23, %cst_25 [1] : vector<2x8x128xf32> to vector<2x128xf32>
    %25 = arith.addf %22, %24 : vector<2x128xf32>
    %c0_26 = arith.constant 0 : index
    %c2_27 = arith.constant 2 : index
    %c0_28 = arith.constant 0 : index
    %c0_29 = arith.constant 0 : index
    %26 = vector.load %arg4[%c0_26, %c2_27, %c0_28, %c0_29] : memref<1x3x2x128xf32, #tpu.memory_space<vmem>>, vector<1x1x2x128xf32>
    %27 = vector.shape_cast %26 : vector<1x1x2x128xf32> to vector<2x128xf32>
    %28 = vector.shape_cast %25 : vector<2x128xf32> to vector<1x1x2x128xf32>
    tpu.vector_store %arg4[%c0_26, %c2_27, %c0_28, %c0_29], %28 {strides = array<i32>} : memref<1x3x2x128xf32, #tpu.memory_space<vmem>>, vector<1x1x2x128xf32>,
    return
  }
  func.func @transform_0(%arg0: i32, %arg1: i32) -> (i32, i32, i32) {
    %c1_i32 = arith.constant 1 : i32
    %0 = arith.muli %arg0, %c1_i32 : i32
    %1 = arith.addi %0, %arg1 : i32
    %c0_i32 = arith.constant 0 : i32
    %c0_i32_0 = arith.constant 0 : i32
    %c0_i32_1 = arith.constant 0 : i32
    return %c0_i32, %1, %c0_i32_0 : i32, i32, i32
  }
  func.func @transform_1(%arg0: i32, %arg1: i32) -> (i32, i32, i32) {
    %c1_i32 = arith.constant 1 : i32
    %0 = arith.muli %arg0, %c1_i32 : i32
    %1 = arith.addi %0, %arg1 : i32
    %c0_i32 = arith.constant 0 : i32
    %c0_i32_0 = arith.constant 0 : i32
    %c0_i32_1 = arith.constant 0 : i32
    return %c0_i32, %1, %c0_i32_0 : i32, i32, i32
  }
  func.func @transform_2(%arg0: i32, %arg1: i32) -> (i32, i32, i32, i32) {
    %c0_i32 = arith.constant 0 : i32
    %c0_i32_0 = arith.constant 0 : i32
    %c0_i32_1 = arith.constant 0 : i32
    %c0_i32_2 = arith.constant 0 : i32
    return %arg0, %c0_i32, %c0_i32_0, %c0_i32_1 : i32, i32, i32, i32
  }
}

</mosaic_0001>

<llo_original>
// kernel: tpu_custom_call.1
$region0: #{tpu_custom_call.1}
  #allocation0 [shape = 'u32[]', space=smem, size = 0x4, offset = 0x4, fixed_abs, tag = 'smem constant byte address 0x4 - core index']
  #allocation1 [shape = 'u32[144,128]{1,0:T(1,128)}', space=vmem, size = 0x12000, scoped, tag = 'internal scratch']
  %s0 = inlined_call_operand.hbm [shape: f32[2,16,128], index: 0, kind: input, shape index: {}]
  %s1 = inlined_call_operand.hbm [shape: f32[2,16,128], index: 1, kind: input, shape index: {}]
  %s2 = inlined_call_operand.hbm [shape: f32[2,3,2,128], index: 2, kind: output, shape index: {}]
  %s3 = sld [smem:[#allocation0]]
  $region53: #{tpu_custom_call.1} parent=0
    _
  %s5 = ssub.s32 1, %s3
  %s6 = scalar_select 0, %s5, %s3
  $region1: #{tpu_custom_call.1} parent=0
    #allocation2 [shape = 'u8[16384]{0}', space=vmem, size = 0x4000, scoped, tag = 'input window, operand 0']
    #allocation3 [shape = 's32[2]{0}', space=sflag, size = 0x8, scoped, tag = 'scoped memory for tpu_custom_call.1']
    #allocation4 [shape = 's32[2]{0}', space=sflag, size = 0x8, scoped, tag = 'scoped memory for tpu_custom_call.1']
    #allocation5 [shape = 'u8[16384]{0}', space=vmem, size = 0x4000, scoped, tag = 'input window, operand 1']
    #allocation6 [shape = 's32[2]{0}', space=sflag, size = 0x8, scoped, tag = 'scoped memory for tpu_custom_call.1']
    #allocation7 [shape = 'u8[6144]{0}', space=vmem, size = 0x1800, scoped, tag = 'output window, operand 0']
    %7 = vsyncpa [#allocation3], 0
    %s8 = scalar_lea.sflag [#allocation3], 1
    %9 = vsyncpa %s8, 0
    %10 = vsyncpa [#allocation6], 0
    %s11 = scalar_lea.sflag [#allocation6], 1
    %12 = vsyncpa %s11, 0
    %13 = vsyncpa [#allocation4], 0
    %s14 = scalar_lea.sflag [#allocation4], 1
    %15 = vsyncpa %s14, 0
    loop: start=0, step=1, limit=4
    $region2: #{tpu_custom_call.1} parent=1 // loop_pre_header
      _
    $region3: #{tpu_custom_call.1} parent=1 // loop_header
      %s17 = sphi 0, %s21
      %p18 = scmp.ge.s32.totalorder %s17, 4
      %s24 = sphi 0, %s36
      %s25 = sphi 0, %s32
      %s26 = sphi 0, %s24
      %s27 = sphi 0, %s25
      %s28 = sphi 0, %s26
      %s29 = sphi 0, %s27
      %s41 = sphi 0, %s43
      %s44 = sphi 0, %s41
      %s45 = sphi 0, %s44
      %s61 = sphi 0, %s45
      %s69 = sphi 0, %s71
      %s72 = sphi 0, %s69
      %s73 = sphi 0, %s72
      %s89 = sphi 0, %s73
      %s95 = sphi 0, %s97
      %s98 = sphi 0, %s95
      %s99 = sphi 0, %s98
      %s115 = sphi 0, %s99
    $region4: #{tpu_custom_call.1} parent=1 // loop_header_branch
      %20 = sbr.rel (%p18) target = $region8
    $region5: #{tpu_custom_call.1} parent=1 // loop_body
      %s22 = ssub.s32 %s17, 1
      %s23 = ssub.s32 %s17, 2
      %s30 = sadd.s32 1, %s25
      %p31 = scmp.ge.s32.totalorder %s30, 1
      %s32 = scalar_select %p31, 0, %s30
      %s33 = sadd.s32 1, %s24
      %s34 = scalar_select %p31, %s33, %s24
      %p35 = scmp.ge.s32.totalorder %s34, 2
      %s36 = scalar_select %p35, 0, %s34
      %s37 = sadd.s32 %s24, %s25
      %s38 = sadd.s32 %s36, %s32
      %s39 = ssub.s32 %s37, %s38
      %p40 = scmp.eq.s32.totalorder %s39, 0
      %s42 = sadd.s32 %s41, 1
      %s43 = scalar_select %p40, %s41, %s42
      %p46 = pneg %p40
      %p47 = scmp.eq.s32.totalorder %s17, 1
      %p48 = por %p46, %p47
      %p49 = scmp.ne.s32.totalorder %s41, %s44
      %p50 = scmp.eq.s32.totalorder %s17, 0
      %p51 = por %p49, %p50
      %p52 = scmp.ne.s32.totalorder %s41, %s44
      %p53 = scmp.eq.s32.totalorder %s22, 1
      %p54 = por %p52, %p53
      %p55 = scmp.ne.s32.totalorder %s44, %s45
      %p56 = scmp.eq.s32.totalorder %s22, 0
      %p57 = por %p55, %p56
      %p58 = scmp.ne.s32.totalorder %s44, %s45
      %p59 = scmp.eq.s32.totalorder %s23, 1
      %p60 = por %p58, %p59
      %p62 = scmp.ne.s32.totalorder %s45, %s61
      %p63 = scmp.eq.s32.totalorder %s23, 0
      %p64 = por %p62, %p63
      %s65 = sadd.s32 %s24, %s25
      %s66 = sadd.s32 %s36, %s32
      %s67 = ssub.s32 %s65, %s66
      %p68 = scmp.eq.s32.totalorder %s67, 0
      %s70 = sadd.s32 %s69, 1
      %s71 = scalar_select %p68, %s69, %s70
      %p74 = pneg %p68
      %p75 = scmp.eq.s32.totalorder %s17, 1
      %p76 = por %p74, %p75
      %p77 = scmp.ne.s32.totalorder %s69, %s72
      %p78 = scmp.eq.s32.totalorder %s17, 0
      %p79 = por %p77, %p78
      %p80 = scmp.ne.s32.totalorder %s69, %s72
      %p81 = scmp.eq.s32.totalorder %s22, 1
      %p82 = por %p80, %p81
      %p83 = scmp.ne.s32.totalorder %s72, %s73
      %p84 = scmp.eq.s32.totalorder %s22, 0
      %p85 = por %p83, %p84
      %p86 = scmp.ne.s32.totalorder %s72, %s73
      %p87 = scmp.eq.s32.totalorder %s23, 1
      %p88 = por %p86, %p87
      %p90 = scmp.ne.s32.totalorder %s73, %s89
      %p91 = scmp.eq.s32.totalorder %s23, 0
      %p92 = por %p90, %p91
      %s93 = ssub.s32 %s24, %s36
      %p94 = scmp.eq.s32.totalorder %s93, 0
      %s96 = sadd.s32 %s95, 1
      %s97 = scalar_select %p94, %s95, %s96
      %p100 = pneg %p94
      %p101 = scmp.eq.s32.totalorder %s17, 1
      %p102 = por %p100, %p101
      %p103 = scmp.ne.s32.totalorder %s95, %s98
      %p104 = scmp.eq.s32.totalorder %s17, 0
      %p105 = por %p103, %p104
      %p106 = scmp.ne.s32.totalorder %s95, %s98
      %p107 = scmp.eq.s32.totalorder %s22, 1
      %p108 = por %p106, %p107
      %p109 = scmp.ne.s32.totalorder %s98, %s99
      %p110 = scmp.eq.s32.totalorder %s22, 0
      %p111 = por %p109, %p110
      %p112 = scmp.ne.s32.totalorder %s98, %s99
      %p113 = scmp.eq.s32.totalorder %s23, 1
      %p114 = por %p112, %p113
      %p116 = scmp.ne.s32.totalorder %s99, %s115
      %p117 = scmp.eq.s32.totalorder %s23, 0
      %p118 = por %p116, %p117
      %p119 = scmp.le.s32.totalorder 1, %s17
      %p120 = scmp.lt.s32.totalorder %s17, 3
      %p121 = pnand %p119, %p120
      %p122 = pneg %p121
      // Predicated region
      $region9: #{tpu_custom_call.1} parent=5 // pred_check
        _
      $region10: #{tpu_custom_call.1} parent=5 // pred_check_branch
        %124 = sbr.rel (%p121) target = $region12
      $region11: #{tpu_custom_call.1} parent=5 // pred_region
        %s125 = ssub.s32 %s17, 1
      $region12: #{tpu_custom_call.1} parent=5 // pred_fallthru
        _
      %p126 = scmp.lt.s32.totalorder %s17, 2
      // Predicated region
      $region13: #{tpu_custom_call.1} parent=5 // pred_check
        %p127 = pneg %p126
      $region14: #{tpu_custom_call.1} parent=5 // pred_check_branch
        %129 = sbr.rel (%p127) target = $region16
      $region15: #{tpu_custom_call.1} parent=5 // pred_region
        // Predicated region
        $region17: #{tpu_custom_call.1} parent=15 // pred_check
          %p130 = pneg %p51
        $region18: #{tpu_custom_call.1} parent=15 // pred_check_branch
          %132 = sbr.rel (%p130) target = $region20
        $region19: #{tpu_custom_call.1} parent=15 // pred_region
          %s133 = sand.u32 %s41, 1
          %s134 = scalar_lea.sflag [#allocation3], %s133
          %s135 = sand.u32 %s41, 1
          %s136 = smul.addr %s135, 16
          %s137 = scalar_lea.vmem [#allocation2], %s136
          %s138 = sadd.s32 %s24, %s25
          %s140 = ssub.s32 256, 256
          %141 = vsyncadd %s134, %s140
          %s142 = smul.addr %s138, 128
          %s143 = scalar_lea.hbm %s0, %s142
          %s144 = sshll.u32 %s137, 4
          %s145 = int_to_ptr.vmem [resolvable:$true] %s144
          %150 = dma.hbm_to_vmem [thread:$0]  %s143, 256, %s145, %s134, 256, 128, 8
        $region20: #{tpu_custom_call.1} parent=15 // pred_fallthru
          _
        // Predicated region
        $region21: #{tpu_custom_call.1} parent=15 // pred_check
          %p151 = pneg %p79
        $region22: #{tpu_custom_call.1} parent=15 // pred_check_branch
          %153 = sbr.rel (%p151) target = $region24
        $region23: #{tpu_custom_call.1} parent=15 // pred_region
          %s154 = sand.u32 %s69, 1
          %s155 = scalar_lea.sflag [#allocation6], %s154
          %s156 = sand.u32 %s69, 1
          %s157 = smul.addr %s156, 16
          %s158 = scalar_lea.vmem [#allocation5], %s157
          %s159 = sadd.s32 %s24, %s25
          %s161 = ssub.s32 256, 256
          %162 = vsyncadd %s155, %s161
          %s163 = smul.addr %s159, 128
          %s164 = scalar_lea.hbm %s1, %s163
          %s165 = sshll.u32 %s158, 4
          %s166 = int_to_ptr.vmem [resolvable:$true] %s165
          %171 = dma.hbm_to_vmem [thread:$0]  %s164, 256, %s166, %s155, 256, 128, 8
        $region24: #{tpu_custom_call.1} parent=15 // pred_fallthru
          _
      $region16: #{tpu_custom_call.1} parent=5 // pred_fallthru
        _
      %p172 = scmp.le.s32.totalorder 1, %s17
      %p173 = scmp.lt.s32.totalorder %s17, 3
      %p174 = pnand %p172, %p173
      %p175 = pneg %p174
      // Predicated region
      $region25: #{tpu_custom_call.1} parent=5 // pred_check
        _
      $region26: #{tpu_custom_call.1} parent=5 // pred_check_branch
        %177 = sbr.rel (%p174) target = $region28
      $region27: #{tpu_custom_call.1} parent=5 // pred_region
        %s178 = ssub.s32 %s17, 1
        %s179 = sand.u32 %s44, 1
        %s180 = scalar_lea.sflag [#allocation3], %s179
        %s181 = sand.u32 %s44, 1
        %s182 = smul.addr %s181, 16
        %s183 = scalar_lea.vmem [#allocation2], %s182
        // Predicated region
        $region29: #{tpu_custom_call.1} parent=27 // pred_check
          %p184 = pneg %p57
        $region30: #{tpu_custom_call.1} parent=27 // pred_check_branch
          %186 = sbr.rel (%p184) target = $region32
        $region31: #{tpu_custom_call.1} parent=27 // pred_region
          %187 = dma.done %s180, 256
        $region32: #{tpu_custom_call.1} parent=27 // pred_fallthru
          _
        %s188 = sand.u32 %s72, 1
        %s189 = scalar_lea.sflag [#allocation6], %s188
        %s190 = sand.u32 %s72, 1
        %s191 = smul.addr %s190, 16
        %s192 = scalar_lea.vmem [#allocation5], %s191
        // Predicated region
        $region33: #{tpu_custom_call.1} parent=27 // pred_check
          %p193 = pneg %p85
        $region34: #{tpu_custom_call.1} parent=27 // pred_check_branch
          %195 = sbr.rel (%p193) target = $region36
        $region35: #{tpu_custom_call.1} parent=27 // pred_region
          %196 = dma.done %s189, 256
        $region36: #{tpu_custom_call.1} parent=27 // pred_fallthru
          _
        %s197 = sand.u32 %s44, 1
        %s198 = scalar_lea.sflag [#allocation3], %s197
        %s199 = sand.u32 %s44, 1
        %s200 = smul.addr %s199, 16
        %s201 = scalar_lea.vmem [#allocation2], %s200
        %p202 = pneg %p57
        %p203 = pneg %p54
        %s204 = sand.u32 %s72, 1
        %s205 = scalar_lea.sflag [#allocation6], %s204
        %s206 = sand.u32 %s72, 1
        %s207 = smul.addr %s206, 16
        %s208 = scalar_lea.vmem [#allocation5], %s207
        %p209 = pneg %p85
        %p210 = pneg %p82
        %p211 = pneg %p111
        %p212 = pneg %p108
        %s213 = sand.u32 %s98, 1
        %s214 = scalar_lea.sflag [#allocation4], %s213
        %s215 = sand.u32 %s98, 1
        %s216 = smul.addr %s215, 6
        %s217 = scalar_lea.vmem [#allocation7], %s216
        %s218 = sadd.s32 %s26, %s27
        %s219 = sadd.s32 %s26, %s27
        %p220 = scmp.eq.s32.totalorder %s27, 0
        // Predicated region
        $region37: #{tpu_custom_call.1} parent=27 // pred_check
          %p221 = pneg %p220
        $region38: #{tpu_custom_call.1} parent=27 // pred_check_branch
          %223 = sbr.rel (%p221) target = $region40
        $region39: #{tpu_custom_call.1} parent=27 // pred_region
          %224 = vst [vmem:[%s217] sm:$0x3] 0.0
          %225 = vst [vmem:[%s217 + $0x2] sm:$0x3] 0.0
          %226 = vst [vmem:[%s217 + $0x4] sm:$0x3] 0.0
        $region40: #{tpu_custom_call.1} parent=27 // pred_fallthru
          _
        %v227 = vld [vmem:[%s183] sm:$0xff]
        %v228 = vld [vmem:[%s183 + $0x8] sm:$0xff]
        %v229 = vld [vmem:[%s192] sm:$0xff]
        %v230 = vld [vmem:[%s192 + $0x8] sm:$0xff]
        %v231 = vld [vmem:[%s217] sm:$0x3]
        %v232 = vmul.f32 %v227, %v229
        %v233 = vmul.f32 %v228, %v230
        %v234 = vrot.slane %v232, 4
        %v235 = vadd.f32 %v232, %v234
        %v236 = vrot.slane %v235, 2
        %v237 = vadd.f32 %v235, %v236
        %v238 = vrot.slane %v237, 1
        %v239 = vadd.f32 %v237, %v238
        %v240 = vrot.slane %v233, 4
        %v241 = vadd.f32 %v233, %v240
        %v242 = vrot.slane %v241, 2
        %v243 = vadd.f32 %v241, %v242
        %v244 = vrot.slane %v243, 1
        %v245 = vadd.f32 %v243, %v244
        %vm248 = vcmask 1041409
        %v249 = vsel %vm248, %v245, %v239
        %v251 = vadd.f32 %v231, %v249
        %252 = vst [vmem:[%s217] sm:$0x3] %v251
        %s253 = scalar_lea.vmem %s217, 2 [#allocation7]
        %v254 = vld [vmem:[%s253] sm:$0x3]
        %v255 = vmul.f32 %v227, %v227
        %v256 = vmul.f32 %v228, %v228
        %v257 = vrot.slane %v255, 4
        %v258 = vadd.f32 %v255, %v257
        %v259 = vrot.slane %v258, 2
        %v260 = vadd.f32 %v258, %v259
        %v261 = vrot.slane %v260, 1
        %v262 = vadd.f32 %v260, %v261
        %v263 = vrot.slane %v256, 4
        %v264 = vadd.f32 %v256, %v263
        %v265 = vrot.slane %v264, 2
        %v266 = vadd.f32 %v264, %v265
        %v267 = vrot.slane %v266, 1
        %v268 = vadd.f32 %v266, %v267
        %v271 = vsel %vm248, %v268, %v262
        %v273 = vadd.f32 %v254, %v271
        %274 = vst [vmem:[%s253] sm:$0x3] %v273
        %s275 = scalar_lea.vmem %s217, 4 [#allocation7]
        %v276 = vld [vmem:[%s275] sm:$0x3]
        %v277 = vmul.f32 %v229, %v229
        %v278 = vmul.f32 %v230, %v230
        %v279 = vrot.slane %v277, 4
        %v280 = vadd.f32 %v277, %v279
        %v281 = vrot.slane %v280, 2
        %v282 = vadd.f32 %v280, %v281
        %v283 = vrot.slane %v282, 1
        %v284 = vadd.f32 %v282, %v283
        %v285 = vrot.slane %v278, 4
        %v286 = vadd.f32 %v278, %v285
        %v287 = vrot.slane %v286, 2
        %v288 = vadd.f32 %v286, %v287
        %v289 = vrot.slane %v288, 1
        %v290 = vadd.f32 %v288, %v289
        %v293 = vsel %vm248, %v290, %v284
        %v295 = vadd.f32 %v276, %v293
        %296 = vst [vmem:[%s275] sm:$0x3] %v295
        %s297 = sand.u32 %s98, 1
        %s298 = scalar_lea.sflag [#allocation4], %s297
        %s299 = sand.u32 %s98, 1
        %s300 = smul.addr %s299, 6
        %s301 = scalar_lea.vmem [#allocation7], %s300
        // Predicated region
        $region41: #{tpu_custom_call.1} parent=27 // pred_check
          %p302 = pneg %p108
        $region42: #{tpu_custom_call.1} parent=27 // pred_check_branch
          %304 = sbr.rel (%p302) target = $region44
        $region43: #{tpu_custom_call.1} parent=27 // pred_region
          %s306 = ssub.s32 96, 96
          %307 = vsyncadd %s298, %s306
          %s308 = smul.addr %s26, 3
          %s309 = smul.addr %s308, 32
          %s310 = scalar_lea.hbm %s2, %s309
          %s311 = sshll.u32 %s301, 4
          %s312 = int_to_ptr.vmem [resolvable:$true] %s311
          %317 = dma.vmem_to_hbm [thread:$0]  %s312, 96, %s310, %s298, 32, 32, 2
        $region44: #{tpu_custom_call.1} parent=27 // pred_fallthru
          _
      $region28: #{tpu_custom_call.1} parent=5 // pred_fallthru
        _
      %p318 = scmp.le.s32.totalorder 2, %s17
      // Predicated region
      $region45: #{tpu_custom_call.1} parent=5 // pred_check
        %p319 = pneg %p318
      $region46: #{tpu_custom_call.1} parent=5 // pred_check_branch
        %321 = sbr.rel (%p319) target = $region48
      $region47: #{tpu_custom_call.1} parent=5 // pred_region
        %s322 = ssub.s32 %s17, 2
        // Predicated region
        $region49: #{tpu_custom_call.1} parent=47 // pred_check
          %p323 = pneg %p114
        $region50: #{tpu_custom_call.1} parent=47 // pred_check_branch
          %325 = sbr.rel (%p323) target = $region52
        $region51: #{tpu_custom_call.1} parent=47 // pred_region
          %s326 = sand.u32 %s99, 1
          %s327 = scalar_lea.sflag [#allocation4], %s326
          %s328 = sand.u32 %s99, 1
          %s329 = smul.addr %s328, 6
          %s330 = scalar_lea.vmem [#allocation7], %s329
          %331 = dma.done %s327, 96
        $region52: #{tpu_custom_call.1} parent=47 // pred_fallthru
          _
      $region48: #{tpu_custom_call.1} parent=5 // pred_fallthru
        _
    $region6: #{tpu_custom_call.1} parent=1 // loop_footer
      %s21 = sadd.s32 1, %s17
    $region7: #{tpu_custom_call.1} parent=1 // loop_footer_branch
      %16 = sbr.rel target = $region3
    $region8: #{tpu_custom_call.1} parent=1 // loop_exit
      _
    %332 = vsyncpa [#allocation3], 1
    %s333 = scalar_lea.sflag [#allocation3], 1
    %334 = vsyncpa %s333, 1
    %335 = vsyncpa [#allocation6], 1
    %s336 = scalar_lea.sflag [#allocation6], 1
    %337 = vsyncpa %s336, 1
    %338 = vsyncpa [#allocation4], 1
    %s339 = scalar_lea.sflag [#allocation4], 1
    %340 = vsyncpa %s339, 1

</llo_original>
